<compile_context>
chip_gen: v5e
topology: v5e:2x2
jax: 0.10.0
libtpu: 0.0.40
codegen_flags: <defaults>
</compile_context>

<pallas_src>
import jax
import jax.numpy as jnp
from jax import lax
from jax.experimental import pallas as pl
from jax.experimental.pallas import tpu as pltpu


def _round_up(x, m):
    return ((x + m - 1) // m) * m


def _masked_mean_kernel(seq_ref, x_ref, o_ref, acc_ref):
    # seq_ref: VMEM (Bt, 1) int32 valid lengths for this batch tile
    # x_ref:   VMEM (Bt, tT, H) input tile for (batch tile i, time tile k)
    # o_ref:   VMEM (Bt, H) output tile (resident across the time axis)
    # acc_ref: VMEM (Bt, H) f32 accumulator scratch
    k = pl.program_id(1)

    @pl.when(k == 0)
    def _init():
        acc_ref[...] = jnp.zeros_like(acc_ref)

    Bt, tT, H = x_ref.shape
    # Global timestep index of every (row, t) position in this tile.
    t_ids = k * tT + lax.broadcasted_iota(jnp.int32, (Bt, tT, 1), dimension=1)
    lens = seq_ref[...].reshape(Bt, 1, 1)            # per-row valid length
    x = x_ref[...].astype(jnp.float32)
    acc_ref[...] += jnp.sum(jnp.where(t_ids < lens, x, 0.0), axis=1)  # (Bt, H)

    @pl.when(k == pl.num_programs(1) - 1)
    def _finalize():
        inv_n = 1.0 / seq_ref[...].astype(jnp.float32)          # (Bt, 1)
        o_ref[...] = (acc_ref[...] * inv_n).astype(o_ref.dtype)  # (Bt, H)


def _masked_average_pool(x, seq, *, batch_tile=None, time_tile=None):
    """x: [B, T, H], seq: [B] int  ->  [B, H] (mean over the first seq[b] timesteps)."""
    B, T, H = x.shape
    itemsize = jnp.dtype(x.dtype).itemsize

    # Batch tile: at least 8 rows (sublane-dense output stores), capped to bound padding waste.
    Bt = batch_tile if batch_tile is not None else min(_round_up(B, 8), 64)
    Bt = _round_up(Bt, 8)
    Bp = _round_up(B, Bt)

    # Time tile: largest multiple of 8 keeping the (Bt, tT, H) input block <= ~6 MiB,
    # so the double-buffered pipeline (~12 MiB) fits the scoped-VMEM budget on v5e/v6e/v7x.
    if time_tile is None:
        budget = 6 * 1024 * 1024
        tT = max(8, (budget // max(1, Bt * H * itemsize)) // 8 * 8)
    else:
        tT = _round_up(time_tile, 8)
    tT = min(tT, _round_up(T, 8))
    Tp = _round_up(T, tT)

    # Zero-pad data; pad lengths with 1 (padded rows are sliced off, and 1 avoids 0-div noise).
    x_p = x if (Bp, Tp) == (B, T) else jnp.pad(x, ((0, Bp - B), (0, Tp - T), (0, 0)))
    seq_p = seq.astype(jnp.int32)
    if Bp != B:
        seq_p = jnp.pad(seq_p, (0, Bp - B), constant_values=1)
    seq_p = seq_p.reshape(Bp, 1)

    grid = (Bp // Bt, Tp // tT)

    out = pl.pallas_call(
        _masked_mean_kernel,
        out_shape=jax.ShapeDtypeStruct((Bp, H), x.dtype),
        grid_spec=pltpu.PrefetchScalarGridSpec(
            num_scalar_prefetch=0,
            grid=grid,
            in_specs=[
                pl.BlockSpec((Bt, 1), lambda i, k: (i, 0)),      # per-row lengths
                pl.BlockSpec((Bt, tT, H), lambda i, k: (i, k, 0)),
            ],
            out_specs=pl.BlockSpec((Bt, H), lambda i, k: (i, 0)),
            scratch_shapes=[pltpu.VMEM((Bt, H), jnp.float32)],
        ),
        compiler_params=pltpu.CompilerParams(
            dimension_semantics=("parallel", "arbitrary"),
            vmem_limit_bytes=32 * 1024 * 1024,
        ),
        cost_estimate=pl.CostEstimate(
            flops=2 * Bp * Tp * H,
            transcendentals=0,
            bytes_accessed=Bp * Tp * H * itemsize + Bp * H * itemsize + Bp * 4,
        ),
    )(seq_p, x_p)
    return out[:B]


def average_pooling(blstm_data, blstm_seq=None, **tile_kwargs):
    """JAX/Pallas equivalent of AveragePooling.forward."""
    if blstm_seq is None:
        # torch.mean(blstm_data, dim=0).unsqueeze(0). Per the perf review this single
        # full-tensor mean is already at the HBM roofline in plain XLA; funnelling it
        # through the masked kernel would only add padding/DMA overhead.
        return jnp.mean(blstm_data, axis=0)[None]
    return _masked_average_pool(blstm_data, blstm_seq, **tile_kwargs)


def _reference(blstm_data, blstm_seq=None):
    if blstm_seq is None:
        return jnp.mean(blstm_data, axis=0)[None]
    B, T, H = blstm_data.shape
    mask = (jnp.arange(T)[None, :, None] < blstm_seq[:, None, None]).astype(blstm_data.dtype)
    return jnp.sum(blstm_data * mask, axis=1) / blstm_seq[:, None].astype(blstm_data.dtype)


if __name__ == "__main__":
    key = jax.random.PRNGKey(0)

    # Case 1: the hot path — variable-length masked mean pooling.
    B, T, H = 4, 8, 32
    blstm_data = jax.random.normal(key, (B, T, H), dtype=jnp.float32)
    blstm_seq = jnp.array([8, 5, 3, 1], dtype=jnp.int32)
    out = jax.block_until_ready(average_pooling(blstm_data, blstm_seq))
    ref = _reference(blstm_data, blstm_seq)
    assert out.shape == (B, H)
    assert jnp.allclose(out, ref, atol=1e-5, rtol=1e-5)

    # Case 2: exercise the multi-step T reduction + batch/time padding path
    # (B=5 -> padded to 8 rows; T=20 with tT=8 -> 3 time steps with zero-padded tail).
    B2, T2, H2 = 5, 20, 32
    k1, k2 = jax.random.split(key)
    data2 = jax.random.normal(k1, (B2, T2, H2), dtype=jnp.float32)
    seq2 = jnp.array([20, 13, 7, 1, 16], dtype=jnp.int32)
    out2 = jax.block_until_ready(average_pooling(data2, seq2, time_tile=8))
    ref2 = _reference(data2, seq2)
    assert out2.shape == (B2, H2)
    assert jnp.allclose(out2, ref2, atol=1e-5, rtol=1e-5)

    # Case 3: blstm_seq is None -> mean over dim 0, unsqueezed.
    out_none = jax.block_until_ready(average_pooling(blstm_data, None))
    ref_none = _reference(blstm_data, None)
    assert out_none.shape == (1, T, H)
    assert jnp.allclose(out_none, ref_none, atol=1e-5, rtol=1e-5)

    print("KERNEL_OK")
</pallas_src>

<mosaic_0001>
module attributes {stable_mosaic.version = 11 : i64} {
  func.func @_masked_mean_kernel(%arg0: i32, %arg1: i32, %arg2: memref<8x1xi32, #tpu.memory_space<vmem>>, %arg3: memref<8x8x32xf32, #tpu.memory_space<vmem>>, %arg4: memref<8x32xf32, #tpu.memory_space<vmem>>, %arg5: memref<8x32xf32, #tpu.memory_space<vmem>>) attributes {dimension_semantics = [#tpu.dimension_semantics<parallel>, #tpu.dimension_semantics<arbitrary>], iteration_bounds = array<i64: 1, 1>, scalar_prefetch = 0 : i64, scratch_operands = 1 : i64, tpu.core_type = #tpu.core_type<tc>, window_params = [{transform_indices = @transform_0, window_bounds = array<i64: 8, 1>}, {transform_indices = @transform_1, window_bounds = array<i64: 8, 8, 32>}, {transform_indices = @transform_2, window_bounds = array<i64: 8, 32>}]} {
    %c0_i32 = arith.constant 0 : i32
    %0 = arith.cmpi eq, %arg1, %c0_i32 : i32
    %1 = arith.extui %0 : i1 to i32
    %c0_i32_0 = arith.constant 0 : i32
    %2 = arith.cmpi ne, %1, %c0_i32_0 : i32
    scf.if %2 {
      %cst_12 = arith.constant 0.000000e+00 : f32
      %23 = vector.broadcast %cst_12 : f32 to vector<8x32xf32>
      %c0_13 = arith.constant 0 : index
      %c0_14 = arith.constant 0 : index
      %24 = vector.load %arg5[%c0_13, %c0_14] : memref<8x32xf32, #tpu.memory_space<vmem>>, vector<8x32xf32>
      tpu.vector_store %arg5[%c0_13, %c0_14], %23 {strides = array<i32>} : memref<8x32xf32, #tpu.memory_space<vmem>>, vector<8x32xf32>,
    } else {
    }
    %c8_i32 = arith.constant 8 : i32
    %3 = arith.muli %arg1, %c8_i32 : i32
    %4 = tpu.iota {dimensions = array<i32: 1>} : vector<8x8x1xi32>
    %5 = vector.broadcast %3 : i32 to vector<8x8x1xi32>
    %6 = arith.addi %5, %4 : vector<8x8x1xi32>
    %c0 = arith.constant 0 : index
    %c0_1 = arith.constant 0 : index
    %7 = vector.load %arg2[%c0, %c0_1] : memref<8x1xi32, #tpu.memory_space<vmem>>, vector<8x1xi32>
    %8 = vector.shape_cast %7 : vector<8x1xi32> to vector<8x1x1xi32>
    %c0_2 = arith.constant 0 : index
    %c0_3 = arith.constant 0 : index
    %c0_4 = arith.constant 0 : index
    %9 = vector.load %arg3[%c0_2, %c0_3, %c0_4] : memref<8x8x32xf32, #tpu.memory_space<vmem>>, vector<8x8x32xf32>
    %c0_5 = arith.constant 0 : index
    %c0_6 = arith.constant 0 : index
    %10 = vector.load %arg5[%c0_5, %c0_6] : memref<8x32xf32, #tpu.memory_space<vmem>>, vector<8x32xf32>
    %11 = vector.broadcast %8 : vector<8x1x1xi32> to vector<8x8x1xi32>
    %12 = arith.cmpi slt, %6, %11 : vector<8x8x1xi32>
    %cst = arith.constant 0.000000e+00 : f32
    %13 = vector.shape_cast %12 : vector<8x8x1xi1> to vector<8x8x1xi1>
    %14 = vector.broadcast %13 : vector<8x8x1xi1> to vector<8x8x32xi1>
    %15 = vector.broadcast %cst : f32 to vector<8x8x32xf32>
    %16 = arith.select %14, %9, %15 : vector<8x8x32xi1>, vector<8x8x32xf32>
    %cst_7 = arith.constant dense<0.000000e+00> : vector<8x32xf32>
    %17 = vector.multi_reduction <add>, %16, %cst_7 [1] : vector<8x8x32xf32> to vector<8x32xf32>
    %18 = arith.addf %10, %17 : vector<8x32xf32>
    %c0_8 = arith.constant 0 : index
    %c0_9 = arith.constant 0 : index
    %19 = vector.load %arg5[%c0_8, %c0_9] : memref<8x32xf32, #tpu.memory_space<vmem>>, vector<8x32xf32>
    tpu.vector_store %arg5[%c0_8, %c0_9], %18 {strides = array<i32>} : memref<8x32xf32, #tpu.memory_space<vmem>>, vector<8x32xf32>,
    %c0_i32_10 = arith.constant 0 : i32
    %20 = arith.cmpi eq, %arg1, %c0_i32_10 : i32
    %21 = arith.extui %20 : i1 to i32
    %c0_i32_11 = arith.constant 0 : i32
    %22 = arith.cmpi ne, %21, %c0_i32_11 : i32
    scf.if %22 {
      %c0_12 = arith.constant 0 : index
      %c0_13 = arith.constant 0 : index
      %23 = vector.load %arg2[%c0_12, %c0_13] : memref<8x1xi32, #tpu.memory_space<vmem>>, vector<8x1xi32>
      %24 = arith.sitofp %23 : vector<8x1xi32> to vector<8x1xf32>
      %cst_14 = arith.constant 1.000000e+00 : f32
      %25 = vector.broadcast %cst_14 : f32 to vector<8x1xf32>
      %26 = arith.divf %25, %24 : vector<8x1xf32>
      %c0_15 = arith.constant 0 : index
      %c0_16 = arith.constant 0 : index
      %27 = vector.load %arg5[%c0_15, %c0_16] : memref<8x32xf32, #tpu.memory_space<vmem>>, vector<8x32xf32>
      %28 = vector.broadcast %26 : vector<8x1xf32> to vector<8x32xf32>
      %29 = arith.mulf %27, %28 : vector<8x32xf32>
      %c0_17 = arith.constant 0 : index
      %c0_18 = arith.constant 0 : index
      %30 = vector.load %arg4[%c0_17, %c0_18] : memref<8x32xf32, #tpu.memory_space<vmem>>, vector<8x32xf32>
      tpu.vector_store %arg4[%c0_17, %c0_18], %29 {strides = array<i32>} : memref<8x32xf32, #tpu.memory_space<vmem>>, vector<8x32xf32>,
    } else {
    }
    return
  }
  func.func @transform_0(%arg0: i32, %arg1: i32) -> (i32, i32) {
    %c0_i32 = arith.constant 0 : i32
    %c0_i32_0 = arith.constant 0 : i32
    return %arg0, %c0_i32 : i32, i32
  }
  func.func @transform_1(%arg0: i32, %arg1: i32) -> (i32, i32, i32) {
    %c0_i32 = arith.constant 0 : i32
    %c0_i32_0 = arith.constant 0 : i32
    return %arg0, %arg1, %c0_i32 : i32, i32, i32
  }
  func.func @transform_2(%arg0: i32, %arg1: i32) -> (i32, i32) {
    %c0_i32 = arith.constant 0 : i32
    %c0_i32_0 = arith.constant 0 : i32
    return %arg0, %c0_i32 : i32, i32
  }
}

</mosaic_0001>

<llo_original>
// kernel: tpu_custom_call.1
$region0: #{tpu_custom_call.1}
  #allocation0 [shape = 'u32[]', space=smem, size = 0x4, offset = 0x4, fixed_abs, tag = 'smem constant byte address 0x4 - core index']
  #allocation1 [shape = 'u32[72,128]{1,0:T(1,128)}', space=vmem, size = 0x9000, scoped, tag = 'internal scratch']
  #allocation2 [shape = 'f32[8,32]{1,0:T(8,128)}', space=vmem, size = 0x1000, scoped, tag = 'scratch operand']
  %s0 = inlined_call_operand.vmem [shape: s32[8,1], index: 0, kind: input, shape index: {}]
  %s1 = inlined_call_operand.hbm [shape: f32[8,8,32], index: 1, kind: input, shape index: {}]
  %s2 = inlined_call_operand.hbm [shape: f32[8,32], index: 2, kind: output, shape index: {}]
  %s3 = sld [smem:[#allocation0]]
  $region30: #{tpu_custom_call.1} parent=0
    _
  %s5 = ssub.s32 1, %s3
  %s6 = scalar_select 0, %s5, %s3
  $region1: #{tpu_custom_call.1} parent=0
    #allocation3 [shape = 'u8[32768]{0}', space=vmem, size = 0x8000, scoped, tag = 'input window, operand 1, single buffered']
    #allocation4 [shape = 's32[1]{0}', space=sflag, size = 0x4, scoped, tag = 'scoped memory for tpu_custom_call.1']
    #allocation5 [shape = 's32[1]{0}', space=sflag, size = 0x4, scoped, tag = 'scoped memory for tpu_custom_call.1']
    #allocation6 [shape = 'u8[4096]{0}', space=vmem, size = 0x1000, scoped, tag = 'output window, operand 0, single buffered']
    %7 = vsyncpa [#allocation4], 0
    %8 = vsyncpa [#allocation5], 0
    // Predicated region
    $region2: #{tpu_custom_call.1} parent=1 // pred_check
      _
    $region3: #{tpu_custom_call.1} parent=1 // pred_check_branch
      %10 = sbr.rel (0) target = $region5
    $region4: #{tpu_custom_call.1} parent=1 // pred_region
      _
    $region5: #{tpu_custom_call.1} parent=1 // pred_fallthru
      _
    // Predicated region
    $region6: #{tpu_custom_call.1} parent=1 // pred_check
      _
    $region7: #{tpu_custom_call.1} parent=1 // pred_check_branch
      %12 = sbr.rel (0) target = $region9
    $region8: #{tpu_custom_call.1} parent=1 // pred_region
      %14 = vsyncadd [#allocation4], 0
      %s15 = sshll.u32 %s1, 4
      %s16 = int_to_ptr.hbm [resolvable:$true] %s15
      %s17 = sshll.u32 [#allocation3], 4
      %s18 = int_to_ptr.vmem [resolvable:$true] %s17
      %23 = dma.hbm_to_vmem [thread:$0]  %s16, 1024, %s18, [#allocation4], 128, 128, 8
    $region9: #{tpu_custom_call.1} parent=1 // pred_fallthru
      _
    // Predicated region
    $region10: #{tpu_custom_call.1} parent=1 // pred_check
      _
    $region11: #{tpu_custom_call.1} parent=1 // pred_check_branch
      %25 = sbr.rel (0) target = $region13
    $region12: #{tpu_custom_call.1} parent=1 // pred_region
      %27 = dma.done [#allocation4], 1024
    $region13: #{tpu_custom_call.1} parent=1 // pred_fallthru
      _
    %p28 = scmp.eq.s32.totalorder 0, 0
    // Predicated region
    $region14: #{tpu_custom_call.1} parent=1 // pred_check
      %p29 = pneg %p28
    $region15: #{tpu_custom_call.1} parent=1 // pred_check_branch
      %31 = sbr.rel (%p29) target = $region17
    $region16: #{tpu_custom_call.1} parent=1 // pred_region
      %vm32 = vcmask 261120
      %33 = vst.msk [vmem:[#allocation2] sm:$0xff] %vm32, 0.0
    $region17: #{tpu_custom_call.1} parent=1 // pred_fallthru
      _
    %s34 = smul.u32 0, 8
    %v35 = vlaneseq
    %v36 = vshrl.u32 %v35, 7
    %v37 = vstv %s34
    %v38 = vadd.s32 %v37, %v36
    %v39 = vld [vmem:[%s0] sm:$0xff]
    %v40 = vrot.slane %v39, 1
    %v41 = vrot.slane %v39, 2
    %v42 = vrot.slane %v39, 3
    %v43 = vrot.slane %v39, 4
    %v44 = vrot.slane %v39, 5
    %v45 = vrot.slane %v39, 6
    %v46 = vrot.slane %v39, 7
    %v47 = vld [vmem:[#allocation3] sm:$0xff]
    %v48 = vld [vmem:[#allocation3 + $0x8] sm:$0xff]
    %v49 = vld [vmem:[#allocation3 + $0x10] sm:$0xff]
    %v50 = vld [vmem:[#allocation3 + $0x18] sm:$0xff]
    %v51 = vld [vmem:[#allocation3 + $0x20] sm:$0xff]
    %v52 = vld [vmem:[#allocation3 + $0x28] sm:$0xff]
    %v53 = vld [vmem:[#allocation3 + $0x30] sm:$0xff]
    %v54 = vld [vmem:[#allocation3 + $0x38] sm:$0xff]
    %v55 = vld [vmem:[#allocation2] sm:$0xff]
    %v56 = vperm.slane %v39, 0
    %v57 = vperm.slane %v40, 0
    %v58 = vperm.slane %v41, 0
    %v59 = vperm.slane %v42, 0
    %v60 = vperm.slane %v43, 0
    %v61 = vperm.slane %v44, 0
    %v62 = vperm.slane %v45, 0
    %v63 = vperm.slane %v46, 0
    %vm64 = vcmp.lt.s32.totalorder %v38, %v56
    %vm65 = vcmp.lt.s32.totalorder %v38, %v57
    %vm66 = vcmp.lt.s32.totalorder %v38, %v58
    %vm67 = vcmp.lt.s32.totalorder %v38, %v59
    %vm68 = vcmp.lt.s32.totalorder %v38, %v60
    %vm69 = vcmp.lt.s32.totalorder %v38, %v61
    %vm70 = vcmp.lt.s32.totalorder %v38, %v62
    %vm71 = vcmp.lt.s32.totalorder %v38, %v63
    %v72 = vsel %vm64, 1, 0
    %v73 = vsel %vm65, 1, 0
    %v74 = vsel %vm66, 1, 0
    %v75 = vsel %vm67, 1, 0
    %v76 = vsel %vm68, 1, 0
    %v77 = vsel %vm69, 1, 0
    %v78 = vsel %vm70, 1, 0
    %v79 = vsel %vm71, 1, 0
    %80 = vset.pattern.permute.xlu0 0
    %81 = vperm.xlu0 %80, %v72
    %v82 = vpop.permute.xlu0 %81
    %83 = vset.pattern.permute.xlu0 0
    %84 = vperm.xlu0 %83, %v73
    %v85 = vpop.permute.xlu0 %84
    %86 = vset.pattern.permute.xlu0 0
    %87 = vperm.xlu0 %86, %v74
    %v88 = vpop.permute.xlu0 %87
    %89 = vset.pattern.permute.xlu0 0
    %90 = vperm.xlu0 %89, %v75
    %v91 = vpop.permute.xlu0 %90
    %92 = vset.pattern.permute.xlu0 0
    %93 = vperm.xlu0 %92, %v76
    %v94 = vpop.permute.xlu0 %93
    %95 = vset.pattern.permute.xlu0 0
    %96 = vperm.xlu0 %95, %v77
    %v97 = vpop.permute.xlu0 %96
    %98 = vset.pattern.permute.xlu0 0
    %99 = vperm.xlu0 %98, %v78
    %v100 = vpop.permute.xlu0 %99
    %101 = vset.pattern.permute.xlu0 0
    %102 = vperm.xlu0 %101, %v79
    %v103 = vpop.permute.xlu0 %102
    %vm104 = vcmp.eq.s32.totalorder %v82, 1
    %vm105 = vcmp.eq.s32.totalorder %v85, 1
    %vm106 = vcmp.eq.s32.totalorder %v88, 1
    %vm107 = vcmp.eq.s32.totalorder %v91, 1
    %vm108 = vcmp.eq.s32.totalorder %v94, 1
    %vm109 = vcmp.eq.s32.totalorder %v97, 1
    %vm110 = vcmp.eq.s32.totalorder %v100, 1
    %vm111 = vcmp.eq.s32.totalorder %v103, 1
    %v112 = vsel %vm104, %v47, 0.0
    %v113 = vsel %vm105, %v48, 0.0
    %v114 = vsel %vm106, %v49, 0.0
    %v115 = vsel %vm107, %v50, 0.0
    %v116 = vsel %vm108, %v51, 0.0
    %v117 = vsel %vm109, %v52, 0.0
    %v118 = vsel %vm110, %v53, 0.0
    %v119 = vsel %vm111, %v54, 0.0
    %vm120 = vcmask 261120
    %v121 = vsel %vm120, %v112, 0.0
    %v122 = vrot.slane %v121, 4
    %v123 = vadd.f32 %v121, %v122
    %v124 = vrot.slane %v123, 2
    %v125 = vadd.f32 %v123, %v124
    %v126 = vrot.slane %v125, 1
    %v127 = vadd.f32 %v125, %v126
    %v128 = vsel %vm120, %v113, 0.0
    %v129 = vrot.slane %v128, 4
    %v130 = vadd.f32 %v128, %v129
    %v131 = vrot.slane %v130, 2
    %v132 = vadd.f32 %v130, %v131
    %v133 = vrot.slane %v132, 1
    %v134 = vadd.f32 %v132, %v133
    %v135 = vsel %vm120, %v114, 0.0
    %v136 = vrot.slane %v135, 4
    %v137 = vadd.f32 %v135, %v136
    %v138 = vrot.slane %v137, 2
    %v139 = vadd.f32 %v137, %v138
    %v140 = vrot.slane %v139, 1
    %v141 = vadd.f32 %v139, %v140
    %v142 = vsel %vm120, %v115, 0.0
    %v143 = vrot.slane %v142, 4
    %v144 = vadd.f32 %v142, %v143
    %v145 = vrot.slane %v144, 2
    %v146 = vadd.f32 %v144, %v145
    %v147 = vrot.slane %v146, 1
    %v148 = vadd.f32 %v146, %v147
    %v149 = vsel %vm120, %v116, 0.0
    %v150 = vrot.slane %v149, 4
    %v151 = vadd.f32 %v149, %v150
    %v152 = vrot.slane %v151, 2
    %v153 = vadd.f32 %v151, %v152
    %v154 = vrot.slane %v153, 1
    %v155 = vadd.f32 %v153, %v154
    %v156 = vsel %vm120, %v117, 0.0
    %v157 = vrot.slane %v156, 4
    %v158 = vadd.f32 %v156, %v157
    %v159 = vrot.slane %v158, 2
    %v160 = vadd.f32 %v158, %v159
    %v161 = vrot.slane %v160, 1
    %v162 = vadd.f32 %v160, %v161
    %v163 = vsel %vm120, %v118, 0.0
    %v164 = vrot.slane %v163, 4
    %v165 = vadd.f32 %v163, %v164
    %v166 = vrot.slane %v165, 2
    %v167 = vadd.f32 %v165, %v166
    %v168 = vrot.slane %v167, 1
    %v169 = vadd.f32 %v167, %v168
    %v170 = vsel %vm120, %v119, 0.0
    %v171 = vrot.slane %v170, 4
    %v172 = vadd.f32 %v170, %v171
    %v173 = vrot.slane %v172, 2
    %v174 = vadd.f32 %v172, %v173
    %v175 = vrot.slane %v174, 1
    %v176 = vadd.f32 %v174, %v175
    %vm185 = vcmask 1041409
    %v186 = vsel %vm185, %v134, %v127
    %vm187 = vcmask 1042434
    %v188 = vsel %vm187, %v141, %v186
    %vm189 = vcmask 1043459
    %v190 = vsel %vm189, %v148, %v188
    %vm191 = vcmask 1044484
    %v192 = vsel %vm191, %v155, %v190
    %vm193 = vcmask 1045509
    %v194 = vsel %vm193, %v162, %v192
    %vm195 = vcmask 1046534
    %v196 = vsel %vm195, %v169, %v194
    %vm197 = vcmask 1047559
    %v198 = vsel %vm197, %v176, %v196
    %v200 = vadd.f32 %v55, %v198
    %201 = vst.msk [vmem:[#allocation2] sm:$0xff] %vm120, %v200
    // Predicated region
    $region18: #{tpu_custom_call.1} parent=1 // pred_check
      %p202 = pneg %p28
    $region19: #{tpu_custom_call.1} parent=1 // pred_check_branch
      %204 = sbr.rel (%p202) target = $region21
    $region20: #{tpu_custom_call.1} parent=1 // pred_region
      %v205 = vld [vmem:[%s0] sm:$0xff]
      %v206 = vcvt.s32.f32 %v205
      %v207 = vrcp.pop %v206
      %v208 = vmul.f32 %v206, %v207
      %v209 = vsub.f32 1.0, %v208
      %v210 = vmul.f32 %v207, %v209
      %v211 = vadd.f32 %v207, %v210
      %vm212 = vweird.f32 %v206
      %vm213 = vweird.f32 %v207
      %vm214 = vmor %vm212, %vm213
      %v215 = vsel %vm214, %v207, %v211
      %v216 = vand.u32 2147483647, %v206
      %vm217 = vcmp.eq.f32.partialorder %v216, 8.507059e+37
      %v218 = vand.u32 %v206, 2147483648
      %v219 = vor.u32 1.1754944e-38, %v218
      %v220 = vsel %vm217, %v219, %v215
      %v221 = vmul.f32 1.0, %v220
      %v222 = vld [vmem:[#allocation2] sm:$0xff]
      %224 = vset.pattern.permute.xlu0 0
      %225 = vperm.xlu0 %224, %v221
      %v226 = vpop.permute.xlu0 %225
      %v228 = vmul.f32 %v222, %v226
      %229 = vst.msk [vmem:[#allocation6] sm:$0xff] %vm120, %v228
    $region21: #{tpu_custom_call.1} parent=1 // pred_fallthru
      _
    // Predicated region
    $region22: #{tpu_custom_call.1} parent=1 // pred_check
      _
    $region23: #{tpu_custom_call.1} parent=1 // pred_check_branch
      %231 = sbr.rel (0) target = $region25
    $region24: #{tpu_custom_call.1} parent=1 // pred_region
      %233 = vsyncadd [#allocation5], 0
      %s235 = sshll.u32 [#allocation6], 4
      %s236 = int_to_ptr.vmem [resolvable:$true] %s235
      %s237 = sshll.u32 %s2, 4
      %s238 = int_to_ptr.hbm [resolvable:$true] %s237
      %240 = dma.vmem_to_hbm [thread:$0]  %s236, 128, %s238, [#allocation5]
    $region25: #{tpu_custom_call.1} parent=1 // pred_fallthru
      _
    // Predicated region
    $region26: #{tpu_custom_call.1} parent=1 // pred_check
      _
    $region27: #{tpu_custom_call.1} parent=1 // pred_check_branch
      %242 = sbr.rel (0) target = $region29
    $region28: #{tpu_custom_call.1} parent=1 // pred_region
      %244 = dma.done [#allocation5], 128
    $region29: #{tpu_custom_call.1} parent=1 // pred_fallthru
      _
    %245 = vsyncpa [#allocation4], 1
    %246 = vsyncpa [#allocation5], 1

</llo_original>
